<compile_context>
chip_gen: v7x
topology: tpu7x:2x2x1
jax: 0.10.0
libtpu: 0.0.40
codegen_flags: <defaults>
</compile_context>

<pallas_src>
import functools

import jax
import jax.numpy as jnp
from jax import lax
from jax.experimental import pallas as pl
from jax.experimental.pallas import tpu as pltpu


def _pnorm_kernel(x_ref, o_ref, acc_ref, *, p, hw, hw_blk):
    hw_idx = pl.program_id(1)

    @pl.when(hw_idx == 0)
    def _():
        acc_ref[...] = jnp.zeros_like(acc_ref)

    x = x_ref[...].astype(jnp.float32)

    # Specialize the power: integer p stays on the 4-wide VPU (free under DMA);
    # generic float p falls back to pow (exp/log on EUP), matching torch.
    p_f = float(p)
    if p_f == 2.0:
        xp = x * x
    elif p_f == 1.0:
        xp = x
    elif p_f == int(p_f):
        xp = lax.integer_pow(x, int(p_f))
    else:
        xp = x ** p_f

    # Mask lanes past the true spatial extent (ragged last hw block).
    if hw % hw_blk != 0:
        lane = lax.broadcasted_iota(jnp.int32, xp.shape, 1)
        valid = (hw_idx * hw_blk + lane) < hw
        xp = jnp.where(valid, xp, 0.0)

    acc_ref[...] += jnp.sum(xp, axis=-1, keepdims=True)

    @pl.when(hw_idx == pl.num_programs(1) - 1)
    def _():
        s = acc_ref[...]
        if p_f == 2.0:
            r = jnp.sqrt(s)
        elif p_f == 1.0:
            r = s
        else:
            r = s ** (1.0 / p_f)
        o_ref[...] = r.astype(o_ref.dtype)


def pnorm_ch(x, p, *, r_blk=None, hw_blk=None):
    """Pallas TPU implementation of Pnorm_ch.forward.

    Args:
      x: (N, C, H, W) array.
      p: scalar power (static python number).
      r_blk / hw_blk: optional tile-size overrides (for testing / tuning).
    Returns:
      (N, C, 1, 1) array, same dtype as x.
    """
    N, C, H, W = x.shape
    rows = N * C
    hw = H * W
    x2d = x.reshape(rows, hw)

    # ---- tile sizing -------------------------------------------------------
    # hw block: full spatial extent if small, else a multiple of 128.
    if hw_blk is None:
        hw_blk = hw if hw <= 2048 else 2048
    # row block: sized so one input block is ~<= 4 MiB f32 (double-buffers
    # comfortably inside default scoped VMEM on v5e/v6e and v7x's 64 MiB),
    # rounded to a multiple of 8, or the full row extent if it already fits.
    if r_blk is None:
        target_block_bytes = 4 * 1024 * 1024
        max_rows = max(8, (target_block_bytes // (hw_blk * 4)) // 8 * 8)
        r_blk = rows if rows <= max_rows else max_rows

    grid = (pl.cdiv(rows, r_blk), pl.cdiv(hw, hw_blk))

    itemsize = jnp.dtype(x.dtype).itemsize
    p_f = float(p)
    transcendentals = 0 if p_f == int(p_f) else 2 * rows * hw
    cost = pl.CostEstimate(
        flops=2 * rows * hw,
        transcendentals=transcendentals,
        bytes_accessed=rows * hw * itemsize + rows * itemsize,
    )

    out2d = pl.pallas_call(
        functools.partial(_pnorm_kernel, p=p, hw=hw, hw_blk=hw_blk),
        out_shape=jax.ShapeDtypeStruct((rows, 1), x.dtype),
        grid_spec=pltpu.PrefetchScalarGridSpec(
            num_scalar_prefetch=0,
            grid=grid,
            in_specs=[pl.BlockSpec((r_blk, hw_blk), lambda i, j: (i, j))],
            # output block index invariant over j -> stays resident across the
            # hw reduction; written once at j == last.
            out_specs=pl.BlockSpec((r_blk, 1), lambda i, j: (i, 0)),
            scratch_shapes=[pltpu.VMEM((r_blk, 1), jnp.float32)],
        ),
        compiler_params=pltpu.CompilerParams(
            dimension_semantics=("parallel", "arbitrary"),
        ),
        cost_estimate=cost,
    )(x2d)

    return out2d.reshape(N, C, 1, 1)


def pnorm_ch_ref(x, p):
    # Pure-JAX reference, mirrors the PyTorch forward exactly.
    return jnp.sum(x ** p, axis=(2, 3), keepdims=True) ** (1.0 / p)


if __name__ == "__main__":
    p = 2  # hyperparameter from Pnorm_ch.__init__(p)
    key = jax.random.PRNGKey(0)

    # Main test: shapes consistent with the module.
    x = jax.random.uniform(key, (2, 4, 16, 16), dtype=jnp.float32)
    out = jax.block_until_ready(pnorm_ch(x, p))
    ref = pnorm_ch_ref(x, p)
    assert out.shape == (2, 4, 1, 1), out.shape
    assert jnp.allclose(out, ref, rtol=1e-5, atol=1e-5)

    # Extra test exercising the tiled reduction + ragged row/hw masking paths
    # (forced small tiles so grid > 1 in both axes).
    key2 = jax.random.PRNGKey(1)
    x2 = jax.random.uniform(key2, (2, 6, 17, 19), dtype=jnp.float32)
    out2 = jax.block_until_ready(pnorm_ch(x2, p, r_blk=8, hw_blk=128))
    ref2 = pnorm_ch_ref(x2, p)
    assert out2.shape == (2, 6, 1, 1), out2.shape
    assert jnp.allclose(out2, ref2, rtol=1e-5, atol=1e-5)

    print("KERNEL_OK")
</pallas_src>

<mosaic_0001>
module attributes {stable_mosaic.version = 11 : i64} {
  func.func @_pnorm_kernel(%arg0: i32, %arg1: i32, %arg2: memref<8x256xf32, #tpu.memory_space<vmem>>, %arg3: memref<8x1xf32, #tpu.memory_space<vmem>>, %arg4: memref<8x1xf32, #tpu.memory_space<vmem>>) attributes {dimension_semantics = [#tpu.dimension_semantics<parallel>, #tpu.dimension_semantics<arbitrary>], iteration_bounds = array<i64: 1, 1>, scalar_prefetch = 0 : i64, scratch_operands = 1 : i64, tpu.core_type = #tpu.core_type<tc>, window_params = [{transform_indices = @transform_0, window_bounds = array<i64: 8, 256>}, {transform_indices = @transform_1, window_bounds = array<i64: 8, 1>}]} {
    %c0_i32 = arith.constant 0 : i32
    %0 = arith.cmpi eq, %arg1, %c0_i32 : i32
    %1 = arith.extui %0 : i1 to i32
    %c0_i32_0 = arith.constant 0 : i32
    %2 = arith.cmpi ne, %1, %c0_i32_0 : i32
    scf.if %2 {
      %cst_8 = arith.constant 0.000000e+00 : f32
      %13 = vector.broadcast %cst_8 : f32 to vector<8x1xf32>
      %c0_9 = arith.constant 0 : index
      %c0_10 = arith.constant 0 : index
      %14 = vector.load %arg4[%c0_9, %c0_10] : memref<8x1xf32, #tpu.memory_space<vmem>>, vector<8x1xf32>
      tpu.vector_store %arg4[%c0_9, %c0_10], %13 {strides = array<i32>} : memref<8x1xf32, #tpu.memory_space<vmem>>, vector<8x1xf32>,
    } else {
    }
    %c0 = arith.constant 0 : index
    %c0_1 = arith.constant 0 : index
    %3 = vector.load %arg2[%c0, %c0_1] : memref<8x256xf32, #tpu.memory_space<vmem>>, vector<8x256xf32>
    %4 = arith.mulf %3, %3 : vector<8x256xf32>
    %c0_2 = arith.constant 0 : index
    %c0_3 = arith.constant 0 : index
    %5 = vector.load %arg4[%c0_2, %c0_3] : memref<8x1xf32, #tpu.memory_space<vmem>>, vector<8x1xf32>
    %cst = arith.constant dense<0.000000e+00> : vector<8xf32>
    %6 = vector.multi_reduction <add>, %4, %cst [1] : vector<8x256xf32> to vector<8xf32>
    %7 = vector.shape_cast %6 : vector<8xf32> to vector<8x1xf32>
    %8 = arith.addf %5, %7 : vector<8x1xf32>
    %c0_4 = arith.constant 0 : index
    %c0_5 = arith.constant 0 : index
    %9 = vector.load %arg4[%c0_4, %c0_5] : memref<8x1xf32, #tpu.memory_space<vmem>>, vector<8x1xf32>
    tpu.vector_store %arg4[%c0_4, %c0_5], %8 {strides = array<i32>} : memref<8x1xf32, #tpu.memory_space<vmem>>, vector<8x1xf32>,
    %c0_i32_6 = arith.constant 0 : i32
    %10 = arith.cmpi eq, %arg1, %c0_i32_6 : i32
    %11 = arith.extui %10 : i1 to i32
    %c0_i32_7 = arith.constant 0 : i32
    %12 = arith.cmpi ne, %11, %c0_i32_7 : i32
    scf.if %12 {
      %c0_8 = arith.constant 0 : index
      %c0_9 = arith.constant 0 : index
      %13 = vector.load %arg4[%c0_8, %c0_9] : memref<8x1xf32, #tpu.memory_space<vmem>>, vector<8x1xf32>
      %14 = math.sqrt %13 : vector<8x1xf32>
      %c0_10 = arith.constant 0 : index
      %c0_11 = arith.constant 0 : index
      %15 = vector.load %arg3[%c0_10, %c0_11] : memref<8x1xf32, #tpu.memory_space<vmem>>, vector<8x1xf32>
      tpu.vector_store %arg3[%c0_10, %c0_11], %14 {strides = array<i32>} : memref<8x1xf32, #tpu.memory_space<vmem>>, vector<8x1xf32>,
    } else {
    }
    return
  }
  func.func @transform_0(%arg0: i32, %arg1: i32) -> (i32, i32) {
    %c0_i32 = arith.constant 0 : i32
    return %arg0, %arg1 : i32, i32
  }
  func.func @transform_1(%arg0: i32, %arg1: i32) -> (i32, i32) {
    %c0_i32 = arith.constant 0 : i32
    %c0_i32_0 = arith.constant 0 : i32
    return %arg0, %c0_i32 : i32, i32
  }
}

</mosaic_0001>

<llo_original>
// kernel: tpu_custom_call.1
$region0: #{tpu_custom_call.1}
  #allocation0 [shape = 'u32[]', space=smem, size = 0x4, offset = 0x4, fixed_abs, tag = 'smem constant byte address 0x4 - core index']
  #allocation1 [shape = 'u32[144,128]{1,0:T(1,128)}', space=vmem, size = 0x12000, scoped, tag = 'internal scratch']
  #allocation2 [shape = 'f32[8,1]{1,0:T(8,128)}', space=vmem, size = 0x1000, scoped, tag = 'scratch operand']
  %s0 = inlined_call_operand.hbm [shape: f32[8,256], index: 0, kind: input, shape index: {}]
  %s1 = inlined_call_operand.vmem [shape: f32[8,1], index: 1, kind: output, shape index: {}]
  %s2 = sld [smem:[#allocation0]]
  $region26: #{tpu_custom_call.1} parent=0
    _
  %s4 = ssub.s32 1, %s2
  %s5 = scalar_select 0, %s4, %s2
  $region1: #{tpu_custom_call.1} parent=0
    #allocation3 [shape = 'u8[8192]{0}', space=vmem, size = 0x2000, scoped, tag = 'input window, operand 0, single buffered']
    #allocation4 [shape = 's32[1]{0}', space=sflag, size = 0x4, scoped, tag = 'scoped memory for tpu_custom_call.1']
    %6 = vsyncpa [#allocation4], 0
    // Predicated region
    $region2: #{tpu_custom_call.1} parent=1 // pred_check
      _
    $region3: #{tpu_custom_call.1} parent=1 // pred_check_branch
      %8 = sbr.rel (0) target = $region5
    $region4: #{tpu_custom_call.1} parent=1 // pred_region
      %s10 = ssub.s32 256, 256
      %11 = vsyncadd [#allocation4], %s10
      %s13 = sshll.u32 [#allocation3], 4
      %s14 = int_to_ptr.vmem [resolvable:$true] %s13
      %16 = dma.hbm_to_vmem [thread:$0]  %s0, 256, %s14, [#allocation4]
    $region5: #{tpu_custom_call.1} parent=1 // pred_fallthru
      _
    // Predicated region
    $region6: #{tpu_custom_call.1} parent=1 // pred_check
      _
    $region7: #{tpu_custom_call.1} parent=1 // pred_check_branch
      %18 = sbr.rel (0) target = $region9
    $region8: #{tpu_custom_call.1} parent=1 // pred_region
      %19 = dma.done [#allocation4], 256
    $region9: #{tpu_custom_call.1} parent=1 // pred_fallthru
      _
    %p20 = scmp.eq.s32.totalorder 0, 0
    // Predicated region
    $region10: #{tpu_custom_call.1} parent=1 // pred_check
      %p21 = pneg %p20
    $region11: #{tpu_custom_call.1} parent=1 // pred_check_branch
      %23 = sbr.rel (%p21) target = $region13
    $region12: #{tpu_custom_call.1} parent=1 // pred_region
      %vm24 = vcmask 7168
      %25 = vst.msk [vmem:[#allocation2] sm:$0xff] %vm24, 0.0
    $region13: #{tpu_custom_call.1} parent=1 // pred_fallthru
      _
    %v26 = vld [vmem:[#allocation3] sm:$0xff]
    %v27 = vld [vmem:[#allocation3 + $0x8] sm:$0xff]
    %v28 = vmul.f32 %v26, %v26
    %v29 = vmul.f32 %v27, %v27
    %v30 = vld [vmem:[#allocation2] sm:$0xff]
    %v31 = vadd.f32 %v28, %v29
    %32 = vadd.xlane.f32.xlu0 %v31
    %v33 = vpop.xlane.xlu0 %32
    %v34 = vadd.f32 %v30, %v33
    %vm35 = vcmask 7168
    %36 = vst.msk [vmem:[#allocation2] sm:$0xff] %vm35, %v34
    // Predicated region
    $region14: #{tpu_custom_call.1} parent=1 // pred_check
      %p37 = pneg %p20
    $region15: #{tpu_custom_call.1} parent=1 // pred_check_branch
      %39 = sbr.rel (%p37) target = $region17
    $region16: #{tpu_custom_call.1} parent=1 // pred_region
      %v40 = vld [vmem:[#allocation2] sm:$0xff]
      %v41 = vrsqrt.pop %v40
      %v42 = vmul.f32 %v40, %v41
      %vm43 = vcmp.eq.f32.partialorder %v40, inf
      %v44 = vsel %vm43, %v40, %v42
      %vm45 = vcmp.eq.f32.partialorder %v40, 0.0
      %v46 = vand.u32 %v40, 2147483648
      %v47 = vsel %vm45, %v46, %v44
      %48 = vst.msk [vmem:[%s1] sm:$0xff] %vm35, %v47
    $region17: #{tpu_custom_call.1} parent=1 // pred_fallthru
      _
    // Predicated region
    $region18: #{tpu_custom_call.1} parent=1 // pred_check
      _
    $region19: #{tpu_custom_call.1} parent=1 // pred_check_branch
      %50 = sbr.rel (0) target = $region21
    $region20: #{tpu_custom_call.1} parent=1 // pred_region
      _
    $region21: #{tpu_custom_call.1} parent=1 // pred_fallthru
      _
    // Predicated region
    $region22: #{tpu_custom_call.1} parent=1 // pred_check
      _
    $region23: #{tpu_custom_call.1} parent=1 // pred_check_branch
      %52 = sbr.rel (0) target = $region25
    $region24: #{tpu_custom_call.1} parent=1 // pred_region
      _
    $region25: #{tpu_custom_call.1} parent=1 // pred_fallthru
      _
    %53 = vsyncpa [#allocation4], 1

</llo_original>
